<compile_context>
chip_gen: v6e
topology: v6e:2x2x1
jax: 0.10.0
libtpu: 0.0.40
codegen_flags: <defaults>
</compile_context>

<pallas_src>
import jax
import jax.numpy as jnp
from jax.experimental import pallas as pl
from jax.experimental.pallas import tpu as pltpu

K = 7      # conv kernel size
PAD = 1    # conv padding


def _tensorcores():
    """Best-effort TensorCore count of the local chip (perf heuristic only)."""
    try:
        d = jax.devices()[0]
        for attr in ("num_cores", "core_count"):
            v = getattr(d, attr, None)
            if isinstance(v, int) and v > 0:
                return v
    except Exception:
        pass
    return 1


def _pick_batch_block(n, lp, max_cols=4096):
    """Fattest batch block whose lane width nb*Lp fits the budget.

    On multi-TensorCore chips keep at least `cores` grid steps so both cores
    get work; on single-TC chips (v5e/v6e) just take the fattest block.
    """
    cores = _tensorcores()
    divisors = [d for d in range(1, n + 1) if n % d == 0 and d * lp <= max_cols]
    if not divisors:
        return 1
    if cores > 1:
        multi = [d for d in divisors if n // d >= cores]
        if multi:
            return max(multi)
    return max(divisors)


def _basic_block7x7_kernel(x_ref, w1_ref, w2_ref, bn_ref, mask_ref, o_ref):
    # x_ref : (Cin,  nb*Lp + K-1)  padded input, batch flattened into lanes
    # w1_ref: (Cout, K*Cin)        tap-fused, BN1-scale-folded weights
    # w2_ref: (Cout, K*Cout)       tap-fused, BN2-scale-folded weights
    # bn_ref: (Cout, 2)            [shift1, shift2]
    # mask  : (Cout, nb*Lp)        1.0 on valid conv1 columns, 0.0 on garbage
    # o_ref : (Cout, nb*Lp)
    c_out, W = o_ref.shape
    mxu = w1_ref.dtype

    xe = x_ref[...].astype(jnp.float32)        # (Cin, W + K-1), f32 working copy
    b1 = bn_ref[:, 0:1]
    b2 = bn_ref[:, 1:2]
    mask = mask_ref[...]

    # ---- conv1: 7 taps -> one fused (Cout, K*Cin) x (K*Cin, W) matmul ----
    cols1 = jnp.concatenate([xe[:, k:k + W] for k in range(K)], axis=0)
    acc1 = jnp.dot(w1_ref[...], cols1.astype(mxu),
                   preferred_element_type=jnp.float32)          # (Cout, W) f32

    # ---- bn1 shift (scale folded into w1) + relu; zero inter-segment columns ----
    y = jnp.maximum(acc1 + b1, 0.0) * mask                       # (Cout, W) f32

    # ---- conv2: per-segment zero pad == global shift by PAD (masked cols are 0) ----
    zl = jnp.zeros((c_out, PAD), jnp.float32)
    zr = jnp.zeros((c_out, K - 1 - PAD), jnp.float32)
    ye = jnp.concatenate([zl, y, zr], axis=1)                    # (Cout, W + K-1)
    cols2 = jnp.concatenate([ye[:, k:k + W] for k in range(K)], axis=0)
    acc2 = jnp.dot(w2_ref[...], cols2.astype(mxu),
                   preferred_element_type=jnp.float32)           # (Cout, W) f32

    # ---- bn2 shift + trimmed residual (x[:, 0:L2] == xe shifted by PAD) + relu ----
    res = xe[:, PAD:PAD + W]
    o_ref[...] = jnp.maximum(res + acc2 + b2, 0.0).astype(o_ref.dtype)


def basic_block7x7(x, w1, w2, gamma1, beta1, mean1, var1,
                   gamma2, beta2, mean2, var2, eps=1e-5,
                   mxu_dtype=jnp.bfloat16, batch_block=None):
    """x: (N, Cin, L); w1: (Cout, Cin, 7); w2: (Cout, Cout, 7). Eval-mode BN."""
    N, c_in, L = x.shape
    c_out = w1.shape[0]
    L1 = L + 2 * PAD - (K - 1)           # conv1 output length = L - 4
    L2 = L1 + 2 * PAD - (K - 1)          # conv2 output length = L - 8
    Lp = L + 2 * PAD                     # padded per-batch segment length
    assert L2 > 0 and c_in == c_out, \
        "stride=1 / downsample=None block requires Cin == Cout and L > 8"

    # Fold BN (eval mode): scale goes into the conv weights, shift stays additive.
    s1 = gamma1 * jax.lax.rsqrt(var1 + eps)
    b1 = beta1 - mean1 * s1
    s2 = gamma2 * jax.lax.rsqrt(var2 + eps)
    b2 = beta2 - mean2 * s2
    bn = jnp.stack([b1, b2], axis=1).astype(jnp.float32)          # (Cout, 2)

    # Tap-fused weights (column index = k*Cin + c), scale folded BEFORE the cast.
    w1f = jnp.transpose(w1, (0, 2, 1)).reshape(c_out, K * c_in)
    w2f = jnp.transpose(w2, (0, 2, 1)).reshape(c_out, K * c_out)
    w1r = (s1[:, None] * w1f).astype(mxu_dtype)
    w2r = (s2[:, None] * w2f).astype(mxu_dtype)

    nb = batch_block if batch_block is not None else _pick_batch_block(N, Lp)
    assert N % nb == 0, "batch_block must divide N"
    G = N // nb
    W = nb * Lp
    We = W + (K - 1)

    # Layout plumbing on the XLA side: pad each segment, flatten the batch block
    # into lanes, append K-1 trailing zero columns so tap slices never run OOB.
    xp = jnp.pad(x, ((0, 0), (0, 0), (PAD, PAD)))                 # (N, C, Lp)
    xb = xp.reshape(G, nb, c_in, Lp).transpose(0, 2, 1, 3).reshape(G, c_in, W)
    xb = jnp.pad(xb, ((0, 0), (0, 0), (0, K - 1)))                # (G, C, We)

    # Column n*Lp + l holds a real conv1 output iff l < L1 (rest is cross-segment junk).
    lane = jnp.arange(W) % Lp
    mask = jnp.broadcast_to((lane < L1).astype(jnp.float32), (c_out, W))

    out = pl.pallas_call(
        _basic_block7x7_kernel,
        out_shape=jax.ShapeDtypeStruct((G, c_out, W), x.dtype),
        grid=(G,),
        in_specs=[
            pl.BlockSpec((None, c_in, We), lambda g: (g, 0, 0)),   # input block
            pl.BlockSpec((c_out, K * c_in), lambda g: (0, 0)),     # fused w1
            pl.BlockSpec((c_out, K * c_out), lambda g: (0, 0)),    # fused w2
            pl.BlockSpec((c_out, 2), lambda g: (0, 0)),            # BN shifts
            pl.BlockSpec((c_out, W), lambda g: (0, 0)),            # valid-col mask
        ],
        out_specs=pl.BlockSpec((None, c_out, W), lambda g: (g, 0, 0)),
        compiler_params=pltpu.CompilerParams(
            dimension_semantics=("parallel",),
            vmem_limit_bytes=32 * 1024 * 1024),
    )(xb, w1r, w2r, bn, mask)

    # (G, Cout, nb*Lp) -> (N, Cout, L2): un-flatten the batch block and trim.
    out = out.reshape(G, c_out, nb, Lp).transpose(0, 2, 1, 3).reshape(N, c_out, Lp)
    return out[:, :, :L2]


def _reference(x, w1, w2, gamma1, beta1, mean1, var1,
               gamma2, beta2, mean2, var2, eps=1e-5):
    """Pure-JAX reference mirroring the PyTorch forward (eval-mode BN), f32."""
    def conv(a, w):
        return jax.lax.conv_general_dilated(
            a, w, window_strides=(1,), padding=[(PAD, PAD)],
            dimension_numbers=("NCH", "OIH", "NCH"),
            precision=jax.lax.Precision.HIGHEST,
            preferred_element_type=jnp.float32)

    def bn(a, g, b, m, v):
        return (a - m[None, :, None]) / jnp.sqrt(v[None, :, None] + eps) \
            * g[None, :, None] + b[None, :, None]

    out = jax.nn.relu(bn(conv(x, w1), gamma1, beta1, mean1, var1))
    out = bn(conv(out, w2), gamma2, beta2, mean2, var2)
    d = x.shape[2] - out.shape[2]
    return jax.nn.relu(x[:, :, 0:-d].astype(jnp.float32) + out)


if __name__ == "__main__":
    N, C, L = 2, 8, 32                    # inplanes7 == planes == 8, stride=1
    key = jax.random.PRNGKey(0)
    ks = jax.random.split(key, 9)

    x = jax.random.normal(ks[0], (N, C, L), dtype=jnp.float32)
    w1 = 0.1 * jax.random.normal(ks[1], (C, C, K), dtype=jnp.float32)
    w2 = 0.1 * jax.random.normal(ks[2], (C, C, K), dtype=jnp.float32)
    gamma1 = 1.0 + 0.1 * jax.random.normal(ks[3], (C,), dtype=jnp.float32)
    beta1 = 0.1 * jax.random.normal(ks[4], (C,), dtype=jnp.float32)
    mean1 = 0.1 * jax.random.normal(ks[5], (C,), dtype=jnp.float32)
    var1 = 1.0 + 0.1 * jax.random.uniform(ks[6], (C,), dtype=jnp.float32)
    gamma2 = 1.0 + 0.1 * jax.random.normal(ks[7], (C,), dtype=jnp.float32)
    beta2 = 0.1 * jax.random.normal(ks[8], (C,), dtype=jnp.float32)
    mean2 = jnp.zeros((C,), jnp.float32)
    var2 = jnp.ones((C,), jnp.float32)

    args = (x, w1, w2, gamma1, beta1, mean1, var1, gamma2, beta2, mean2, var2)
    ref = _reference(*args)

    # Exercise both grid shapes (single fat step and one step per batch element)
    # plus the default auto-picked block, in both MXU dtypes.
    out_f32_nb2 = jax.block_until_ready(
        basic_block7x7(*args, mxu_dtype=jnp.float32, batch_block=2))
    out_f32_nb1 = jax.block_until_ready(
        basic_block7x7(*args, mxu_dtype=jnp.float32, batch_block=1))
    out_bf16 = jax.block_until_ready(
        basic_block7x7(*args, mxu_dtype=jnp.bfloat16))

    assert out_f32_nb2.shape == (N, C, L - 8), out_f32_nb2.shape
    assert out_f32_nb1.shape == (N, C, L - 8), out_f32_nb1.shape
    assert out_bf16.shape == (N, C, L - 8), out_bf16.shape

    # f32 MXU path: tolerance covers MXU multi-pass vs XLA conv precision
    # differences; indexing/layout bugs would show up as O(1) errors.
    err_nb2 = float(jnp.max(jnp.abs(out_f32_nb2 - ref)))
    err_nb1 = float(jnp.max(jnp.abs(out_f32_nb1 - ref)))
    assert err_nb2 < 3e-2, err_nb2
    assert err_nb1 < 3e-2, err_nb1
    # bf16 MXU operands (f32 accumulation / BN / residual): loose bound.
    err_bf16 = float(jnp.max(jnp.abs(out_bf16 - ref)))
    assert err_bf16 < 1e-1, err_bf16

    print("KERNEL_OK")
</pallas_src>

<mosaic_0001>
module attributes {stable_mosaic.version = 11 : i64} {
  func.func @_basic_block7x7_kernel(%arg0: i32, %arg1: memref<1x8x74xf32, #tpu.memory_space<vmem>>, %arg2: memref<8x56xf32, #tpu.memory_space<vmem>>, %arg3: memref<8x56xf32, #tpu.memory_space<vmem>>, %arg4: memref<8x2xf32, #tpu.memory_space<vmem>>, %arg5: memref<8x68xf32, #tpu.memory_space<vmem>>, %arg6: memref<1x8x68xf32, #tpu.memory_space<vmem>>) attributes {dimension_semantics = [#tpu.dimension_semantics<parallel>], iteration_bounds = array<i64: 1>, scalar_prefetch = 0 : i64, scratch_operands = 0 : i64, tpu.core_type = #tpu.core_type<tc>, window_params = [{transform_indices = @transform_0, window_bounds = array<i64: 1, 8, 74>}, {pipeline_mode = #tpu.pipeline_mode<synchronous>, transform_indices = @transform_1, window_bounds = array<i64: 8, 56>}, {pipeline_mode = #tpu.pipeline_mode<synchronous>, transform_indices = @transform_2, window_bounds = array<i64: 8, 56>}, {pipeline_mode = #tpu.pipeline_mode<synchronous>, transform_indices = @transform_3, window_bounds = array<i64: 8, 2>}, {pipeline_mode = #tpu.pipeline_mode<synchronous>, transform_indices = @transform_4, window_bounds = array<i64: 8, 68>}, {transform_indices = @transform_5, window_bounds = array<i64: 1, 8, 68>}]} {
    %c0 = arith.constant 0 : index
    %c0_0 = arith.constant 0 : index
    %c0_1 = arith.constant 0 : index
    %0 = vector.load %arg1[%c0, %c0_0, %c0_1] : memref<1x8x74xf32, #tpu.memory_space<vmem>>, vector<1x8x74xf32>
    %1 = vector.shape_cast %0 : vector<1x8x74xf32> to vector<8x74xf32>
    %c0_2 = arith.constant 0 : index
    %c0_3 = arith.constant 0 : index
    %2 = vector.load %arg4[%c0_2, %c0_3] : memref<8x2xf32, #tpu.memory_space<vmem>>, vector<8x1xf32>
    %c0_4 = arith.constant 0 : index
    %c1 = arith.constant 1 : index
    %3 = vector.load %arg4[%c0_4, %c1] : memref<8x2xf32, #tpu.memory_space<vmem>>, vector<8x1xf32>
    %c0_5 = arith.constant 0 : index
    %c0_6 = arith.constant 0 : index
    %4 = vector.load %arg5[%c0_5, %c0_6] : memref<8x68xf32, #tpu.memory_space<vmem>>, vector<8x68xf32>
    %5 = vector.extract_strided_slice %1 {offsets = [0, 0], sizes = [8, 68], strides = [1, 1]} : vector<8x74xf32> to vector<8x68xf32>
    %6 = vector.extract_strided_slice %1 {offsets = [0, 1], sizes = [8, 68], strides = [1, 1]} : vector<8x74xf32> to vector<8x68xf32>
    %7 = vector.extract_strided_slice %1 {offsets = [0, 2], sizes = [8, 68], strides = [1, 1]} : vector<8x74xf32> to vector<8x68xf32>
    %8 = vector.extract_strided_slice %1 {offsets = [0, 3], sizes = [8, 68], strides = [1, 1]} : vector<8x74xf32> to vector<8x68xf32>
    %9 = vector.extract_strided_slice %1 {offsets = [0, 4], sizes = [8, 68], strides = [1, 1]} : vector<8x74xf32> to vector<8x68xf32>
    %10 = vector.extract_strided_slice %1 {offsets = [0, 5], sizes = [8, 68], strides = [1, 1]} : vector<8x74xf32> to vector<8x68xf32>
    %11 = vector.extract_strided_slice %1 {offsets = [0, 6], sizes = [8, 68], strides = [1, 1]} : vector<8x74xf32> to vector<8x68xf32>
    %12 = tpu.concatenate %5, %6, %7, %8, %9, %10, %11 in 0 : vector<8x68xf32>, vector<8x68xf32>, vector<8x68xf32>, vector<8x68xf32>, vector<8x68xf32>, vector<8x68xf32>, vector<8x68xf32> -> vector<56x68xf32>
    %c0_7 = arith.constant 0 : index
    %c0_8 = arith.constant 0 : index
    %13 = vector.load %arg2[%c0_7, %c0_8] : memref<8x56xf32, #tpu.memory_space<vmem>>, vector<8x56xf32>
    %cst = arith.constant dense<0.000000e+00> : vector<8x68xf32>
    %14 = tpu.matmul %13, %12, %cst {dimension_numbers = #tpu.dot_dimension_numbers<[1], [0], [0], [1], [0, 0, 1, 1], [], []>} : vector<8x56xf32>, vector<56x68xf32>, vector<8x68xf32> -> vector<8x68xf32>
    %15 = vector.broadcast %2 : vector<8x1xf32> to vector<8x68xf32>
    %16 = arith.addf %14, %15 : vector<8x68xf32>
    %cst_9 = arith.constant 0.000000e+00 : f32
    %17 = vector.broadcast %cst_9 : f32 to vector<8x68xf32>
    %18 = arith.maximumf %16, %17 : vector<8x68xf32>
    %19 = arith.mulf %18, %4 : vector<8x68xf32>
    %cst_10 = arith.constant 0.000000e+00 : f32
    %20 = vector.broadcast %cst_10 : f32 to vector<8x1xf32>
    %cst_11 = arith.constant 0.000000e+00 : f32
    %21 = vector.broadcast %cst_11 : f32 to vector<8x5xf32>
    %22 = tpu.concatenate %20, %19, %21 in 1 : vector<8x1xf32>, vector<8x68xf32>, vector<8x5xf32> -> vector<8x74xf32>
    %23 = vector.extract_strided_slice %22 {offsets = [0, 0], sizes = [8, 68], strides = [1, 1]} : vector<8x74xf32> to vector<8x68xf32>
    %24 = vector.extract_strided_slice %22 {offsets = [0, 1], sizes = [8, 68], strides = [1, 1]} : vector<8x74xf32> to vector<8x68xf32>
    %25 = vector.extract_strided_slice %22 {offsets = [0, 2], sizes = [8, 68], strides = [1, 1]} : vector<8x74xf32> to vector<8x68xf32>
    %26 = vector.extract_strided_slice %22 {offsets = [0, 3], sizes = [8, 68], strides = [1, 1]} : vector<8x74xf32> to vector<8x68xf32>
    %27 = vector.extract_strided_slice %22 {offsets = [0, 4], sizes = [8, 68], strides = [1, 1]} : vector<8x74xf32> to vector<8x68xf32>
    %28 = vector.extract_strided_slice %22 {offsets = [0, 5], sizes = [8, 68], strides = [1, 1]} : vector<8x74xf32> to vector<8x68xf32>
    %29 = vector.extract_strided_slice %22 {offsets = [0, 6], sizes = [8, 68], strides = [1, 1]} : vector<8x74xf32> to vector<8x68xf32>
    %30 = tpu.concatenate %23, %24, %25, %26, %27, %28, %29 in 0 : vector<8x68xf32>, vector<8x68xf32>, vector<8x68xf32>, vector<8x68xf32>, vector<8x68xf32>, vector<8x68xf32>, vector<8x68xf32> -> vector<56x68xf32>
    %c0_12 = arith.constant 0 : index
    %c0_13 = arith.constant 0 : index
    %31 = vector.load %arg3[%c0_12, %c0_13] : memref<8x56xf32, #tpu.memory_space<vmem>>, vector<8x56xf32>
    %cst_14 = arith.constant dense<0.000000e+00> : vector<8x68xf32>
    %32 = tpu.matmul %31, %30, %cst_14 {dimension_numbers = #tpu.dot_dimension_numbers<[1], [0], [0], [1], [0, 0, 1, 1], [], []>} : vector<8x56xf32>, vector<56x68xf32>, vector<8x68xf32> -> vector<8x68xf32>
    %33 = vector.extract_strided_slice %1 {offsets = [0, 1], sizes = [8, 68], strides = [1, 1]} : vector<8x74xf32> to vector<8x68xf32>
    %34 = arith.addf %33, %32 : vector<8x68xf32>
    %35 = vector.broadcast %3 : vector<8x1xf32> to vector<8x68xf32>
    %36 = arith.addf %34, %35 : vector<8x68xf32>
    %cst_15 = arith.constant 0.000000e+00 : f32
    %37 = vector.broadcast %cst_15 : f32 to vector<8x68xf32>
    %38 = arith.maximumf %36, %37 : vector<8x68xf32>
    %c0_16 = arith.constant 0 : index
    %c0_17 = arith.constant 0 : index
    %c0_18 = arith.constant 0 : index
    %39 = vector.load %arg6[%c0_16, %c0_17, %c0_18] : memref<1x8x68xf32, #tpu.memory_space<vmem>>, vector<1x8x68xf32>
    %40 = vector.shape_cast %39 : vector<1x8x68xf32> to vector<8x68xf32>
    %41 = vector.shape_cast %38 : vector<8x68xf32> to vector<1x8x68xf32>
    tpu.vector_store %arg6[%c0_16, %c0_17, %c0_18], %41 {strides = array<i32>} : memref<1x8x68xf32, #tpu.memory_space<vmem>>, vector<1x8x68xf32>,
    return
  }
  func.func @transform_0(%arg0: i32) -> (i32, i32, i32) {
    %c0_i32 = arith.constant 0 : i32
    %c0_i32_0 = arith.constant 0 : i32
    %c0_i32_1 = arith.constant 0 : i32
    return %arg0, %c0_i32, %c0_i32_0 : i32, i32, i32
  }
  func.func @transform_1(%arg0: i32) -> (i32, i32) {
    %c0_i32 = arith.constant 0 : i32
    %c0_i32_0 = arith.constant 0 : i32
    %c0_i32_1 = arith.constant 0 : i32
    return %c0_i32, %c0_i32_0 : i32, i32
  }
  func.func @transform_2(%arg0: i32) -> (i32, i32) {
    %c0_i32 = arith.constant 0 : i32
    %c0_i32_0 = arith.constant 0 : i32
    %c0_i32_1 = arith.constant 0 : i32
    return %c0_i32, %c0_i32_0 : i32, i32
  }
  func.func @transform_3(%arg0: i32) -> (i32, i32) {
    %c0_i32 = arith.constant 0 : i32
    %c0_i32_0 = arith.constant 0 : i32
    %c0_i32_1 = arith.constant 0 : i32
    return %c0_i32, %c0_i32_0 : i32, i32
  }
  func.func @transform_4(%arg0: i32) -> (i32, i32) {
    %c0_i32 = arith.constant 0 : i32
    %c0_i32_0 = arith.constant 0 : i32
    %c0_i32_1 = arith.constant 0 : i32
    return %c0_i32, %c0_i32_0 : i32, i32
  }
  func.func @transform_5(%arg0: i32) -> (i32, i32, i32) {
    %c0_i32 = arith.constant 0 : i32
    %c0_i32_0 = arith.constant 0 : i32
    %c0_i32_1 = arith.constant 0 : i32
    return %arg0, %c0_i32, %c0_i32_0 : i32, i32, i32
  }
}

</mosaic_0001>

<llo_original>
// kernel: tpu_custom_call.1
$region0: #{tpu_custom_call.1}
  #allocation0 [shape = 'u32[]', space=smem, size = 0x4, offset = 0x4, fixed_abs, tag = 'smem constant byte address 0x4 - core index']
  #allocation1 [shape = 'u32[144,128]{1,0:T(1,128)}', space=vmem, size = 0x12000, scoped, tag = 'internal scratch']
  %s0 = inlined_call_operand.vmem [shape: f32[1,8,74], index: 0, kind: input, shape index: {}]
  %s1 = inlined_call_operand.hbm [shape: f32[8,56], index: 1, kind: input, shape index: {}]
  %s2 = inlined_call_operand.hbm [shape: f32[8,56], index: 2, kind: input, shape index: {}]
  %s3 = inlined_call_operand.vmem [shape: f32[8,2], index: 3, kind: input, shape index: {}]
  %s4 = inlined_call_operand.vmem [shape: f32[8,68], index: 4, kind: input, shape index: {}]
  %s5 = inlined_call_operand.hbm [shape: f32[1,8,68], index: 5, kind: output, shape index: {}]
  %s6 = sld [smem:[#allocation0]]
  $region38: #{tpu_custom_call.1} parent=0
    _
  %s8 = ssub.s32 1, %s6
  %s9 = scalar_select 0, %s8, %s6
  $region1: #{tpu_custom_call.1} parent=0
    #allocation2 [shape = 'u8[4096]{0}', space=vmem, size = 0x1000, scoped, tag = 'input window, operand 1, single buffered']
    #allocation3 [shape = 's32[1]{0}', space=sflag, size = 0x4, scoped, tag = 'scoped memory for tpu_custom_call.1']
    #allocation4 [shape = 's32[1]{0}', space=sflag, size = 0x4, scoped, tag = 'scoped memory for tpu_custom_call.1']
    #allocation5 [shape = 'u8[4096]{0}', space=vmem, size = 0x1000, scoped, tag = 'input window, operand 2, single buffered']
    #allocation6 [shape = 's32[1]{0}', space=sflag, size = 0x4, scoped, tag = 'scoped memory for tpu_custom_call.1']
    #allocation7 [shape = 'u8[4096]{0}', space=vmem, size = 0x1000, scoped, tag = 'output window, operand 0, single buffered']
    %10 = vsyncpa [#allocation3], 0
    %11 = vsyncpa [#allocation6], 0
    %12 = vsyncpa [#allocation4], 0
    // Predicated region
    $region2: #{tpu_custom_call.1} parent=1 // pred_check
      _
    $region3: #{tpu_custom_call.1} parent=1 // pred_check_branch
      %14 = sbr.rel (0) target = $region5
    $region4: #{tpu_custom_call.1} parent=1 // pred_region
      _
    $region5: #{tpu_custom_call.1} parent=1 // pred_fallthru
      _
    // Predicated region
    $region6: #{tpu_custom_call.1} parent=1 // pred_check
      _
    $region7: #{tpu_custom_call.1} parent=1 // pred_check_branch
      %16 = sbr.rel (0) target = $region9
    $region8: #{tpu_custom_call.1} parent=1 // pred_region
      %s18 = ssub.s32 128, 128
      %19 = vsyncadd [#allocation3], %s18
      %s21 = sshll.u32 [#allocation2], 4
      %s22 = int_to_ptr.vmem [resolvable:$true] %s21
      %24 = dma.hbm_to_vmem [thread:$0]  %s1, 128, %s22, [#allocation3]
    $region9: #{tpu_custom_call.1} parent=1 // pred_fallthru
      _
    // Predicated region
    $region10: #{tpu_custom_call.1} parent=1 // pred_check
      _
    $region11: #{tpu_custom_call.1} parent=1 // pred_check_branch
      %26 = sbr.rel (0) target = $region13
    $region12: #{tpu_custom_call.1} parent=1 // pred_region
      %s28 = ssub.s32 128, 128
      %29 = vsyncadd [#allocation6], %s28
      %s31 = sshll.u32 [#allocation5], 4
      %s32 = int_to_ptr.vmem [resolvable:$true] %s31
      %34 = dma.hbm_to_vmem [thread:$0]  %s2, 128, %s32, [#allocation6]
    $region13: #{tpu_custom_call.1} parent=1 // pred_fallthru
      _
    // Predicated region
    $region14: #{tpu_custom_call.1} parent=1 // pred_check
      _
    $region15: #{tpu_custom_call.1} parent=1 // pred_check_branch
      %36 = sbr.rel (0) target = $region17
    $region16: #{tpu_custom_call.1} parent=1 // pred_region
      _
    $region17: #{tpu_custom_call.1} parent=1 // pred_fallthru
      _
    // Predicated region
    $region18: #{tpu_custom_call.1} parent=1 // pred_check
      _
    $region19: #{tpu_custom_call.1} parent=1 // pred_check_branch
      %38 = sbr.rel (0) target = $region21
    $region20: #{tpu_custom_call.1} parent=1 // pred_region
      _
    $region21: #{tpu_custom_call.1} parent=1 // pred_fallthru
      _
    // Predicated region
    $region22: #{tpu_custom_call.1} parent=1 // pred_check
      _
    $region23: #{tpu_custom_call.1} parent=1 // pred_check_branch
      %40 = sbr.rel (0) target = $region25
    $region24: #{tpu_custom_call.1} parent=1 // pred_region
      %41 = dma.done [#allocation3], 128
    $region25: #{tpu_custom_call.1} parent=1 // pred_fallthru
      _
    // Predicated region
    $region26: #{tpu_custom_call.1} parent=1 // pred_check
      _
    $region27: #{tpu_custom_call.1} parent=1 // pred_check_branch
      %43 = sbr.rel (0) target = $region29
    $region28: #{tpu_custom_call.1} parent=1 // pred_region
      %44 = dma.done [#allocation6], 128
    $region29: #{tpu_custom_call.1} parent=1 // pred_fallthru
      _
    %v45 = vld [vmem:[%s0] sm:$0xff]
    %v46 = vld [vmem:[%s3] sm:$0xff]
    %v47 = vld [vmem:[%s4] sm:$0xff]
    %49 = vrot.lane.b32.xlu0 %v45, 127
    %v50 = vpop.permute.xlu0 %49
    %52 = vrot.lane.b32.xlu0 %v45, 126
    %v53 = vpop.permute.xlu0 %52
    %55 = vrot.lane.b32.xlu0 %v45, 125
    %v56 = vpop.permute.xlu0 %55
    %58 = vrot.lane.b32.xlu0 %v45, 124
    %v59 = vpop.permute.xlu0 %58
    %61 = vrot.lane.b32.xlu0 %v45, 123
    %v62 = vpop.permute.xlu0 %61
    %64 = vrot.lane.b32.xlu0 %v45, 122
    %v65 = vpop.permute.xlu0 %64
    %v67 = vld [vmem:[#allocation2] sm:$0xff]
    %69 = vset.pattern.permute.xlu0 0
    %70 = vperm.xlu0 %69, %v46
    %v71 = vpop.permute.xlu0 %70
    %vm73 = vcmask 457728
    %v75 = vsel %vm73, %v67, 0
    %77 = vmatprep.subr.mxu0 0.0
    %78 = vmatpush1.msra.mxu0 0.0
    %79 = vmatprep.subr.mxu0 0.0
    %80 = vmatpush1.msra.mxu0 0.0
    %81 = vmatprep.subr.mxu0 0.0
    %82 = vmatpush1.msra.mxu0 0.0
    %83 = vmatprep.subr.mxu0 0.0
    %84 = vmatpush1.msra.mxu0 0.0
    %85 = vmatprep.subr.mxu0 0.0
    %86 = vmatpush1.msra.mxu0 0.0
    %87 = vmatprep.subr.mxu0 0.0
    %88 = vmatpush1.msra.mxu0 0.0
    %89 = vmatprep.subr.mxu0 0.0
    %90 = vmatpush1.msra.mxu0 0.0
    %91 = vmatprep.subr.mxu0 0.0
    %92 = vmatpush1.msra.mxu0 0.0
    %93 = vmatprep.subr.mxu0 0.0
    %94 = vmatpush1.msra.mxu0 0.0
    %95 = vmatprep.subr.mxu0 0.0
    %96 = vmatpush1.msra.mxu0 %v65
    %97 = vmatprep.subr.mxu0 0.0
    %98 = vmatpush1.msra.mxu0 %v62
    %99 = vmatprep.subr.mxu0 0.0
    %100 = vmatpush1.msra.mxu0 %v59
    %101 = vmatprep.subr.mxu0 0.0
    %102 = vmatpush1.msra.mxu0 %v56
    %103 = vmatprep.subr.mxu0 0.0
    %104 = vmatpush1.msra.mxu0 %v53
    %105 = vmatprep.subr.mxu0 0.0
    %106 = vmatpush1.msra.mxu0 %v50
    %107 = vmatprep.subr.mxu0 0.0
    %108 = vmatpush1.msra.mxu0 %v45
    %109 = vmatprep.subr.mxu0 0.0
    %110 = vmatpush2.msra.mxu0 0.0
    %111 = vmatprep.subr.mxu0 0.0
    %112 = vmatpush2.msra.mxu0 0.0
    %113 = vmatprep.subr.mxu0 0.0
    %114 = vmatpush2.msra.mxu0 0.0
    %115 = vmatprep.subr.mxu0 0.0
    %116 = vmatpush2.msra.mxu0 0.0
    %117 = vmatprep.subr.mxu0 0.0
    %118 = vmatpush2.msra.mxu0 0.0
    %119 = vmatprep.subr.mxu0 0.0
    %120 = vmatpush2.msra.mxu0 0.0
    %121 = vmatprep.subr.mxu0 0.0
    %122 = vmatpush2.msra.mxu0 0.0
    %123 = vmatprep.subr.mxu0 0.0
    %124 = vmatpush2.msra.mxu0 0.0
    %125 = vmatprep.subr.mxu0 0.0
    %126 = vmatpush2.msra.mxu0 0.0
    %127 = vmatprep.subr.mxu0 0.0
    %128 = vmatpush2.msra.mxu0 0.0
    %129 = vmatprep.subr.mxu0 0.0
    %130 = vmatpush2.msra.mxu0 0.0
    %131 = vmatprep.subr.mxu0 0.0
    %132 = vmatpush2.msra.mxu0 0.0
    %133 = vmatprep.subr.mxu0 0.0
    %134 = vmatpush2.msra.mxu0 0.0
    %135 = vmatprep.subr.mxu0 0.0
    %136 = vmatpush2.msra.mxu0 0.0
    %137 = vmatprep.subr.mxu0 0.0
    %138 = vmatpush2.msra.mxu0 0.0
    %139 = vmatprep.subr.mxu0 0.0
    %140 = vmatpush2.msra.mxu0 0.0
    %141 = vmatprep.mubr.f32.mxu0 0.0
    %142 = vmatmul.mubr.f32.gmra.mxu0 %v75
    %v143 = vpop.f32.mrf.mxu0
    %v144 = vadd.f32 %v71, %v143
    %v145 = vpop.f32.mrf.mxu0
    %146 = vdwg.mxu0
    %v147 = vmax.f32 %v144, 0.0
    %v148 = vmul.f32 %v147, %v47
    %150 = vrot.lane.b32.xlu0 %v148, 1
    %v151 = vpop.permute.xlu0 %150
    %vm153 = vcmask 7168
    %v154 = vsel %vm153, 0.0, %v151
    %vm155 = vcmask 564224
    %v156 = vsel %vm155, %v154, 0.0
    %158 = vrot.lane.b32.xlu0 %v156, 127
    %v159 = vpop.permute.xlu0 %158
    %161 = vrot.lane.b32.xlu0 %v156, 126
    %v162 = vpop.permute.xlu0 %161
    %164 = vrot.lane.b32.xlu0 %v156, 125
    %v165 = vpop.permute.xlu0 %164
    %167 = vrot.lane.b32.xlu0 %v156, 124
    %v168 = vpop.permute.xlu0 %167
    %170 = vrot.lane.b32.xlu0 %v156, 123
    %v171 = vpop.permute.xlu0 %170
    %173 = vrot.lane.b32.xlu0 %v156, 122
    %v174 = vpop.permute.xlu0 %173
    %v176 = vld [vmem:[#allocation5] sm:$0xff]
    %v178 = vsel %vm73, %v176, 0
    %180 = vmatprep.subr.mxu0 0.0
    %181 = vmatpush1.msra.mxu0 0.0
    %182 = vmatprep.subr.mxu0 0.0
    %183 = vmatpush1.msra.mxu0 0.0
    %184 = vmatprep.subr.mxu0 0.0
    %185 = vmatpush1.msra.mxu0 0.0
    %186 = vmatprep.subr.mxu0 0.0
    %187 = vmatpush1.msra.mxu0 0.0
    %188 = vmatprep.subr.mxu0 0.0
    %189 = vmatpush1.msra.mxu0 0.0
    %190 = vmatprep.subr.mxu0 0.0
    %191 = vmatpush1.msra.mxu0 0.0
    %192 = vmatprep.subr.mxu0 0.0
    %193 = vmatpush1.msra.mxu0 0.0
    %194 = vmatprep.subr.mxu0 0.0
    %195 = vmatpush1.msra.mxu0 0.0
    %196 = vmatprep.subr.mxu0 0.0
    %197 = vmatpush1.msra.mxu0 0.0
    %198 = vmatprep.subr.mxu0 0.0
    %199 = vmatpush1.msra.mxu0 %v174
    %200 = vmatprep.subr.mxu0 0.0
    %201 = vmatpush1.msra.mxu0 %v171
    %202 = vmatprep.subr.mxu0 0.0
    %203 = vmatpush1.msra.mxu0 %v168
    %204 = vmatprep.subr.mxu0 0.0
    %205 = vmatpush1.msra.mxu0 %v165
    %206 = vmatprep.subr.mxu0 0.0
    %207 = vmatpush1.msra.mxu0 %v162
    %208 = vmatprep.subr.mxu0 0.0
    %209 = vmatpush1.msra.mxu0 %v159
    %210 = vmatprep.subr.mxu0 0.0
    %211 = vmatpush1.msra.mxu0 %v156
    %212 = vmatprep.subr.mxu0 0.0
    %213 = vmatpush2.msra.mxu0 0.0
    %214 = vmatprep.subr.mxu0 0.0
    %215 = vmatpush2.msra.mxu0 0.0
    %216 = vmatprep.subr.mxu0 0.0
    %217 = vmatpush2.msra.mxu0 0.0
    %218 = vmatprep.subr.mxu0 0.0
    %219 = vmatpush2.msra.mxu0 0.0
    %220 = vmatprep.subr.mxu0 0.0
    %221 = vmatpush2.msra.mxu0 0.0
    %222 = vmatprep.subr.mxu0 0.0
    %223 = vmatpush2.msra.mxu0 0.0
    %224 = vmatprep.subr.mxu0 0.0
    %225 = vmatpush2.msra.mxu0 0.0
    %226 = vmatprep.subr.mxu0 0.0
    %227 = vmatpush2.msra.mxu0 0.0
    %228 = vmatprep.subr.mxu0 0.0
    %229 = vmatpush2.msra.mxu0 0.0
    %230 = vmatprep.subr.mxu0 0.0
    %231 = vmatpush2.msra.mxu0 0.0
    %232 = vmatprep.subr.mxu0 0.0
    %233 = vmatpush2.msra.mxu0 0.0
    %234 = vmatprep.subr.mxu0 0.0
    %235 = vmatpush2.msra.mxu0 0.0
    %236 = vmatprep.subr.mxu0 0.0
    %237 = vmatpush2.msra.mxu0 0.0
    %238 = vmatprep.subr.mxu0 0.0
    %239 = vmatpush2.msra.mxu0 0.0
    %240 = vmatprep.subr.mxu0 0.0
    %241 = vmatpush2.msra.mxu0 0.0
    %242 = vmatprep.subr.mxu0 0.0
    %243 = vmatpush2.msra.mxu0 0.0
    %244 = vmatprep.mubr.f32.mxu0 0.0
    %245 = vmatmul.mubr.f32.gmra.mxu0 %v178
    %v246 = vpop.f32.mrf.mxu0
    %v247 = vadd.f32 0.0, %v246
    %v248 = vpop.f32.mrf.mxu0
    %249 = vdwg.mxu0
    %251 = vrot.lane.b32.xlu0 %v247, 1
    %v252 = vpop.permute.xlu0 %251
    %v254 = vadd.f32 %v45, %v252
    %255 = vset.pattern.permute.xlu0 1
    %256 = vperm.xlu0 %255, %v46
    %v257 = vpop.permute.xlu0 %256
    %v259 = vadd.f32 %v254, %v257
    %v260 = vmax.f32 %v259, 0.0
    %262 = vrot.lane.b32.xlu0 %v260, 127
    %v263 = vpop.permute.xlu0 %262
    %vm265 = vcmask 556032
    %266 = vst.msk [vmem:[#allocation7] sm:$0xff] %vm265, %v263
    // Predicated region
    $region30: #{tpu_custom_call.1} parent=1 // pred_check
      _
    $region31: #{tpu_custom_call.1} parent=1 // pred_check_branch
      %268 = sbr.rel (0) target = $region33
    $region32: #{tpu_custom_call.1} parent=1 // pred_region
      %s270 = ssub.s32 128, 128
      %271 = vsyncadd [#allocation4], %s270
      %s273 = sshll.u32 [#allocation7], 4
      %s274 = int_to_ptr.vmem [resolvable:$true] %s273
      %276 = dma.vmem_to_hbm [thread:$0]  %s274, 128, %s5, [#allocation4]
    $region33: #{tpu_custom_call.1} parent=1 // pred_fallthru
      _
    // Predicated region
    $region34: #{tpu_custom_call.1} parent=1 // pred_check
      _
    $region35: #{tpu_custom_call.1} parent=1 // pred_check_branch
      %278 = sbr.rel (0) target = $region37
    $region36: #{tpu_custom_call.1} parent=1 // pred_region
      %279 = dma.done [#allocation4], 128
    $region37: #{tpu_custom_call.1} parent=1 // pred_fallthru
      _
    %280 = vsyncpa [#allocation3], 1
    %281 = vsyncpa [#allocation6], 1
    %282 = vsyncpa [#allocation4], 1

</llo_original>
